<compile_context>
chip_gen: v7x
topology: tpu7x:2x2x1
jax: 0.10.0
libtpu: 0.0.40
codegen_flags: <defaults>
</compile_context>

<pallas_src>
import jax
import jax.numpy as jnp
from jax import lax
from jax.experimental import pallas as pl
from jax.experimental.pallas import tpu as pltpu

LN_EPS = 1e-5
# Guards the degenerate all-zero-activation case only (127/0 -> inf in the
# original module); does not change results for any non-degenerate input.
ABSMAX_EPS = 1e-5
VMEM_LIMIT = 32 * 1024 * 1024  # safe on v5e/v6e/v7x; above v5e's 16 MiB default


# --------------------------------------------------------------------------
# Pass 0: LayerNorm (f32 math on VPU/EUP, bf16 output to feed the MXU)
# --------------------------------------------------------------------------
def _layernorm_kernel(x_ref, gamma_ref, beta_ref, xn_ref):
    x = x_ref[...].astype(jnp.float32)              # (tm, D)
    mean = jnp.mean(x, axis=-1, keepdims=True)
    centered = x - mean
    var = jnp.mean(centered * centered, axis=-1, keepdims=True)
    xn = centered * lax.rsqrt(var + LN_EPS)
    xn = xn * gamma_ref[...].astype(jnp.float32) + beta_ref[...].astype(jnp.float32)
    xn_ref[...] = xn.astype(xn_ref.dtype)           # bf16


# --------------------------------------------------------------------------
# Pass 1: tiled bf16 MXU matmul z = xn @ sign(W).T + bias, plus per-tile |z|max
# --------------------------------------------------------------------------
def _matmul_absmax_kernel(xn_ref, wbt_ref, bias_ref, z_ref, tmax_ref, acc_ref):
    k = pl.program_id(2)

    @pl.when(k == 0)
    def _init():
        # Fold the bias add into the accumulator init (saves one VALU pass).
        acc_ref[...] = jnp.broadcast_to(
            bias_ref[...].astype(jnp.float32), acc_ref.shape)

    # bf16 x bf16 -> f32 accumulate on the MXU.
    acc_ref[...] += jnp.dot(xn_ref[...], wbt_ref[...],
                            preferred_element_type=jnp.float32)

    @pl.when(k == pl.num_programs(2) - 1)
    def _finalize():
        z = acc_ref[...]
        z_ref[...] = z
        # Per-output-tile max(|z|), broadcast into a lane-aligned (8,128) tile
        # so the tiny side-output keeps a legal TPU layout.
        tmax_ref[...] = jnp.full(tmax_ref.shape, jnp.max(jnp.abs(z)),
                                 dtype=jnp.float32)


# --------------------------------------------------------------------------
# Pass 2: elementwise quantize / dequantize / rescale: out = round(scale*z) * c
# --------------------------------------------------------------------------
def _quantize_kernel(params_ref, z_ref, out_ref):
    scale = params_ref[0]      # 127 / global absmax
    c = params_ref[1]          # ||W||_F * sqrt(D) / scale
    out_ref[...] = jnp.round(z_ref[...] * scale) * c


def _pick(n, preferred, align):
    """Pick a tile size dividing n: min(n, preferred) if legal, else full n."""
    t = min(n, preferred)
    if n % t == 0 and (t % align == 0 or t == n):
        return t
    return n


@jax.jit
def bitlinear_forward(x, gamma, beta, wbt, bias, w_norm):
    """BitLinear forward.

    x:      (..., D) f32 activations.
    gamma:  (D,) LayerNorm scale.        beta: (D,) LayerNorm shift.
    wbt:    (D, D) bf16, pre-binarized & pre-transposed weight, i.e. sign(W).T
            (precomputed once at init time, not per forward).
    bias:   (D,) f32 linear bias.
    w_norm: scalar f32, Frobenius norm of the *original* f32 weight W.
    Returns the dequantized output, shape (..., D), f32.
    """
    orig_shape = x.shape
    D = orig_shape[-1]
    x2 = x.reshape(-1, D).astype(jnp.float32)
    M = x2.shape[0]
    Dk, N = wbt.shape
    assert Dk == D

    tm = _pick(M, 256, 8)
    tn = _pick(N, 256, 128)
    tk = _pick(D, 256, 128)
    gm, gn, gk = M // tm, N // tn, D // tk

    gamma2 = gamma.reshape(1, D).astype(jnp.float32)
    beta2 = beta.reshape(1, D).astype(jnp.float32)
    bias2 = bias.reshape(1, N).astype(jnp.float32)

    # --- Pass 0: LayerNorm ---
    xn = pl.pallas_call(
        _layernorm_kernel,
        out_shape=jax.ShapeDtypeStruct((M, D), jnp.bfloat16),
        grid=(gm,),
        in_specs=[
            pl.BlockSpec((tm, D), lambda i: (i, 0)),
            pl.BlockSpec((1, D), lambda i: (0, 0)),
            pl.BlockSpec((1, D), lambda i: (0, 0)),
        ],
        out_specs=pl.BlockSpec((tm, D), lambda i: (i, 0)),
        compiler_params=pltpu.CompilerParams(
            dimension_semantics=("parallel",),
            vmem_limit_bytes=VMEM_LIMIT),
    )(x2, gamma2, beta2)

    # --- Pass 1: tiled, pipelined matmul + per-tile absmax ---
    z, tile_max = pl.pallas_call(
        _matmul_absmax_kernel,
        out_shape=(
            jax.ShapeDtypeStruct((M, N), jnp.float32),
            jax.ShapeDtypeStruct((gm * 8, gn * 128), jnp.float32),
        ),
        grid=(gm, gn, gk),
        in_specs=[
            pl.BlockSpec((tm, tk), lambda i, j, k: (i, k)),
            pl.BlockSpec((tk, tn), lambda i, j, k: (k, j)),
            pl.BlockSpec((1, tn), lambda i, j, k: (0, j)),
        ],
        out_specs=(
            pl.BlockSpec((tm, tn), lambda i, j, k: (i, j)),
            pl.BlockSpec((8, 128), lambda i, j, k: (i, j)),
        ),
        scratch_shapes=[pltpu.VMEM((tm, tn), jnp.float32)],
        compiler_params=pltpu.CompilerParams(
            dimension_semantics=("parallel", "parallel", "arbitrary"),
            vmem_limit_bytes=VMEM_LIMIT),
    )(xn, wbt, bias2)

    # --- Global absmax -> scalars (tiny reduction, stays on device) ---
    absmax = jnp.maximum(jnp.max(tile_max), ABSMAX_EPS)
    scale = 127.0 / absmax
    # out = (round(scale*z)/scale) * ||W||_F / D**(-0.5) == round(scale*z) * c
    c = w_norm.astype(jnp.float32) * (float(D) ** 0.5) / scale
    params = jnp.stack([scale, c]).astype(jnp.float32)

    # --- Pass 2: elementwise quantize / rescale (lane-dense output tiles) ---
    tn_q = _pick(N, 1024, 128)
    out = pl.pallas_call(
        _quantize_kernel,
        out_shape=jax.ShapeDtypeStruct((M, N), jnp.float32),
        grid=(gm, N // tn_q),
        in_specs=[
            pl.BlockSpec(memory_space=pltpu.MemorySpace.SMEM),
            pl.BlockSpec((tm, tn_q), lambda i, j: (i, j)),
        ],
        out_specs=pl.BlockSpec((tm, tn_q), lambda i, j: (i, j)),
        compiler_params=pltpu.CompilerParams(
            dimension_semantics=("parallel", "parallel"),
            vmem_limit_bytes=VMEM_LIMIT),
    )(params, z)

    return out.reshape(orig_shape)


def reference_forward(x, gamma, beta, w, bias):
    """Pure-JAX reference mirroring the PyTorch module (kernel compute dtypes:
    LayerNorm in f32, matmul with bf16 inputs / f32 accumulation)."""
    D = x.shape[-1]
    x2 = x.reshape(-1, D).astype(jnp.float32)
    mean = jnp.mean(x2, axis=-1, keepdims=True)
    var = jnp.mean((x2 - mean) ** 2, axis=-1, keepdims=True)
    xn = (x2 - mean) / jnp.sqrt(var + LN_EPS) * gamma + beta
    wb_t = jnp.sign(w.astype(jnp.float32)).T.astype(jnp.bfloat16)
    z = jnp.dot(xn.astype(jnp.bfloat16), wb_t,
                preferred_element_type=jnp.float32) + bias
    absmax = jnp.maximum(jnp.max(jnp.abs(z)), ABSMAX_EPS)
    scale = 127.0 / absmax
    dequant = jnp.round(scale * z) / scale
    out = dequant * jnp.sqrt(jnp.sum(jnp.square(w.astype(jnp.float32)))) \
        * (float(D) ** 0.5)
    return out.reshape(x.shape)


if __name__ == "__main__":
    key = jax.random.PRNGKey(0)
    # Shapes matching the module's own example: x = torch.randn(1, 1, 10, 512)
    B1, B2, S, D = 1, 1, 10, 512
    k_x, k_w, k_b, k_g, k_be = jax.random.split(key, 5)
    x = jax.random.normal(k_x, (B1, B2, S, D), dtype=jnp.float32)

    # nn.Linear(D, D) init: uniform(-1/sqrt(D), 1/sqrt(D)) for weight and bias
    bound = 1.0 / (D ** 0.5)
    w = jax.random.uniform(k_w, (D, D), jnp.float32, -bound, bound)  # (out, in)
    bias = jax.random.uniform(k_b, (D,), jnp.float32, -bound, bound)
    gamma = jnp.ones((D,), jnp.float32) + 0.01 * jax.random.normal(k_g, (D,), jnp.float32)
    beta = 0.01 * jax.random.normal(k_be, (D,), jnp.float32)

    # One-time weight preprocessing (lives at init / parameter-packing time,
    # NOT on the forward path): binarize + transpose to bf16, Frobenius norm.
    wbt = jnp.sign(w).T.astype(jnp.bfloat16)
    w_norm = jnp.sqrt(jnp.sum(jnp.square(w)))

    out = bitlinear_forward(x, gamma, beta, wbt, bias, w_norm)
    out = jax.block_until_ready(out)

    ref = reference_forward(x, gamma, beta, w, bias)
    assert out.shape == x.shape and out.dtype == jnp.float32

    # Tolerance: allow at most ~one 8-bit quantization step of difference
    # (rounding-boundary flips from tiny f32-vs-EUP differences in LayerNorm).
    ref_max = float(jnp.max(jnp.abs(ref)))
    quant_step = ref_max / 127.0
    max_err = float(jnp.max(jnp.abs(out - ref)))
    assert max_err <= 1.5 * quant_step + 1e-3 * ref_max, (
        f"mismatch vs reference: max_err={max_err}, quant_step={quant_step}")

    print("KERNEL_OK")
</pallas_src>

<mosaic_0001>
module attributes {stable_mosaic.version = 11 : i64} {
  func.func @_layernorm_kernel(%arg0: i32, %arg1: memref<10x512xf32, #tpu.memory_space<vmem>>, %arg2: memref<1x512xf32, #tpu.memory_space<vmem>>, %arg3: memref<1x512xf32, #tpu.memory_space<vmem>>, %arg4: memref<10x512xbf16, #tpu.memory_space<vmem>>) attributes {dimension_semantics = [#tpu.dimension_semantics<parallel>], iteration_bounds = array<i64: 1>, scalar_prefetch = 0 : i64, scratch_operands = 0 : i64, tpu.core_type = #tpu.core_type<tc>, window_params = [{transform_indices = @transform_0, window_bounds = array<i64: 10, 512>}, {pipeline_mode = #tpu.pipeline_mode<synchronous>, transform_indices = @transform_1, window_bounds = array<i64: 1, 512>}, {pipeline_mode = #tpu.pipeline_mode<synchronous>, transform_indices = @transform_2, window_bounds = array<i64: 1, 512>}, {transform_indices = @transform_3, window_bounds = array<i64: 10, 512>}]} {
    %c0 = arith.constant 0 : index
    %c0_0 = arith.constant 0 : index
    %0 = vector.load %arg1[%c0, %c0_0] : memref<10x512xf32, #tpu.memory_space<vmem>>, vector<10x512xf32>
    %cst = arith.constant dense<0.000000e+00> : vector<10xf32>
    %1 = vector.multi_reduction <add>, %0, %cst [1] : vector<10x512xf32> to vector<10xf32>
    %2 = vector.shape_cast %1 : vector<10xf32> to vector<10x1xf32>
    %cst_1 = arith.constant 5.120000e+02 : f32
    %3 = vector.broadcast %cst_1 : f32 to vector<10x1xf32>
    %4 = arith.divf %2, %3 : vector<10x1xf32>
    %5 = vector.broadcast %4 : vector<10x1xf32> to vector<10x512xf32>
    %6 = arith.subf %0, %5 : vector<10x512xf32>
    %7 = arith.mulf %6, %6 : vector<10x512xf32>
    %cst_2 = arith.constant dense<0.000000e+00> : vector<10xf32>
    %8 = vector.multi_reduction <add>, %7, %cst_2 [1] : vector<10x512xf32> to vector<10xf32>
    %9 = vector.shape_cast %8 : vector<10xf32> to vector<10x1xf32>
    %cst_3 = arith.constant 5.120000e+02 : f32
    %10 = vector.broadcast %cst_3 : f32 to vector<10x1xf32>
    %11 = arith.divf %9, %10 : vector<10x1xf32>
    %cst_4 = arith.constant 9.99999974E-6 : f32
    %12 = vector.broadcast %cst_4 : f32 to vector<10x1xf32>
    %13 = arith.addf %11, %12 : vector<10x1xf32>
    %14 = math.rsqrt %13 : vector<10x1xf32>
    %15 = vector.broadcast %14 : vector<10x1xf32> to vector<10x512xf32>
    %16 = arith.mulf %6, %15 : vector<10x512xf32>
    %c0_5 = arith.constant 0 : index
    %c0_6 = arith.constant 0 : index
    %17 = vector.load %arg2[%c0_5, %c0_6] : memref<1x512xf32, #tpu.memory_space<vmem>>, vector<1x512xf32>
    %18 = vector.broadcast %17 : vector<1x512xf32> to vector<10x512xf32>
    %19 = arith.mulf %16, %18 : vector<10x512xf32>
    %c0_7 = arith.constant 0 : index
    %c0_8 = arith.constant 0 : index
    %20 = vector.load %arg3[%c0_7, %c0_8] : memref<1x512xf32, #tpu.memory_space<vmem>>, vector<1x512xf32>
    %21 = vector.broadcast %20 : vector<1x512xf32> to vector<10x512xf32>
    %22 = arith.addf %19, %21 : vector<10x512xf32>
    %23 = arith.truncf %22 : vector<10x512xf32> to vector<10x512xbf16>
    %c0_9 = arith.constant 0 : index
    %c0_10 = arith.constant 0 : index
    %24 = vector.load %arg4[%c0_9, %c0_10] : memref<10x512xbf16, #tpu.memory_space<vmem>>, vector<10x512xbf16>
    tpu.vector_store %arg4[%c0_9, %c0_10], %23 {strides = array<i32>} : memref<10x512xbf16, #tpu.memory_space<vmem>>, vector<10x512xbf16>,
    return
  }
  func.func @transform_0(%arg0: i32) -> (i32, i32) {
    %c0_i32 = arith.constant 0 : i32
    %c0_i32_0 = arith.constant 0 : i32
    return %arg0, %c0_i32 : i32, i32
  }
  func.func @transform_1(%arg0: i32) -> (i32, i32) {
    %c0_i32 = arith.constant 0 : i32
    %c0_i32_0 = arith.constant 0 : i32
    %c0_i32_1 = arith.constant 0 : i32
    return %c0_i32, %c0_i32_0 : i32, i32
  }
  func.func @transform_2(%arg0: i32) -> (i32, i32) {
    %c0_i32 = arith.constant 0 : i32
    %c0_i32_0 = arith.constant 0 : i32
    %c0_i32_1 = arith.constant 0 : i32
    return %c0_i32, %c0_i32_0 : i32, i32
  }
  func.func @transform_3(%arg0: i32) -> (i32, i32) {
    %c0_i32 = arith.constant 0 : i32
    %c0_i32_0 = arith.constant 0 : i32
    return %arg0, %c0_i32 : i32, i32
  }
}

module attributes {stable_mosaic.version = 11 : i64} {
  func.func @_matmul_absmax_kernel(%arg0: i32, %arg1: i32, %arg2: i32, %arg3: memref<10x256xbf16, #tpu.memory_space<vmem>>, %arg4: memref<256x256xbf16, #tpu.memory_space<vmem>>, %arg5: memref<1x256xf32, #tpu.memory_space<vmem>>, %arg6: memref<10x256xf32, #tpu.memory_space<vmem>>, %arg7: memref<8x128xf32, #tpu.memory_space<vmem>>, %arg8: memref<10x256xf32, #tpu.memory_space<vmem>>) attributes {dimension_semantics = [#tpu.dimension_semantics<parallel>, #tpu.dimension_semantics<parallel>, #tpu.dimension_semantics<arbitrary>], iteration_bounds = array<i64: 1, 2, 2>, scalar_prefetch = 0 : i64, scratch_operands = 1 : i64, tpu.core_type = #tpu.core_type<tc>, window_params = [{transform_indices = @transform_0, window_bounds = array<i64: 10, 256>}, {transform_indices = @transform_1, window_bounds = array<i64: 256, 256>}, {transform_indices = @transform_2, window_bounds = array<i64: 1, 256>}, {transform_indices = @transform_3, window_bounds = array<i64: 10, 256>}, {transform_indices = @transform_4, window_bounds = array<i64: 8, 128>}]} {
    %c0_i32 = arith.constant 0 : i32
    %0 = arith.cmpi eq, %arg2, %c0_i32 : i32
    %1 = arith.extui %0 : i1 to i32
    %c0_i32_0 = arith.constant 0 : i32
    %2 = arith.cmpi ne, %1, %c0_i32_0 : i32
    scf.if %2 {
      %c0_9 = arith.constant 0 : index
      %c0_10 = arith.constant 0 : index
      %12 = vector.load %arg5[%c0_9, %c0_10] : memref<1x256xf32, #tpu.memory_space<vmem>>, vector<1x256xf32>
      %13 = vector.shape_cast %12 : vector<1x256xf32> to vector<1x256xf32>
      %14 = vector.broadcast %13 : vector<1x256xf32> to vector<10x256xf32>
      %c0_11 = arith.constant 0 : index
      %c0_12 = arith.constant 0 : index
      %15 = vector.load %arg8[%c0_11, %c0_12] : memref<10x256xf32, #tpu.memory_space<vmem>>, vector<10x256xf32>
      tpu.vector_store %arg8[%c0_11, %c0_12], %14 {strides = array<i32>} : memref<10x256xf32, #tpu.memory_space<vmem>>, vector<10x256xf32>,
    } else {
    }
    %c0 = arith.constant 0 : index
    %c0_1 = arith.constant 0 : index
    %3 = vector.load %arg8[%c0, %c0_1] : memref<10x256xf32, #tpu.memory_space<vmem>>, vector<10x256xf32>
    %c0_2 = arith.constant 0 : index
    %c0_3 = arith.constant 0 : index
    %4 = vector.load %arg3[%c0_2, %c0_3] : memref<10x256xbf16, #tpu.memory_space<vmem>>, vector<10x256xbf16>
    %c0_4 = arith.constant 0 : index
    %c0_5 = arith.constant 0 : index
    %5 = vector.load %arg4[%c0_4, %c0_5] : memref<256x256xbf16, #tpu.memory_space<vmem>>, vector<256x256xbf16>
    %cst = arith.constant dense<0.000000e+00> : vector<10x256xf32>
    %6 = tpu.matmul %4, %5, %cst {dimension_numbers = #tpu.dot_dimension_numbers<[1], [0], [0], [1], [0, 0, 1, 1], [], []>} : vector<10x256xbf16>, vector<256x256xbf16>, vector<10x256xf32> -> vector<10x256xf32>
    %7 = arith.addf %3, %6 : vector<10x256xf32>
    %c0_6 = arith.constant 0 : index
    %c0_7 = arith.constant 0 : index
    %8 = vector.load %arg8[%c0_6, %c0_7] : memref<10x256xf32, #tpu.memory_space<vmem>>, vector<10x256xf32>
    tpu.vector_store %arg8[%c0_6, %c0_7], %7 {strides = array<i32>} : memref<10x256xf32, #tpu.memory_space<vmem>>, vector<10x256xf32>,
    %c1_i32 = arith.constant 1 : i32
    %9 = arith.cmpi eq, %arg2, %c1_i32 : i32
    %10 = arith.extui %9 : i1 to i32
    %c0_i32_8 = arith.constant 0 : i32
    %11 = arith.cmpi ne, %10, %c0_i32_8 : i32
    scf.if %11 {
      %c0_9 = arith.constant 0 : index
      %c0_10 = arith.constant 0 : index
      %12 = vector.load %arg8[%c0_9, %c0_10] : memref<10x256xf32, #tpu.memory_space<vmem>>, vector<10x256xf32>
      %c0_11 = arith.constant 0 : index
      %c0_12 = arith.constant 0 : index
      %13 = vector.load %arg6[%c0_11, %c0_12] : memref<10x256xf32, #tpu.memory_space<vmem>>, vector<10x256xf32>
      tpu.vector_store %arg6[%c0_11, %c0_12], %12 {strides = array<i32>} : memref<10x256xf32, #tpu.memory_space<vmem>>, vector<10x256xf32>,
      %14 = math.absf %12 : vector<10x256xf32>
      %15 = vector.shape_cast %14 : vector<10x256xf32> to vector<1x10x256xf32>
      %cst_13 = arith.constant dense<0xFF800000> : vector<1xf32>
      %16 = vector.multi_reduction <maximumf>, %15, %cst_13 [1, 2] : vector<1x10x256xf32> to vector<1xf32>
      %17 = vector.shape_cast %16 : vector<1xf32> to vector<1x1x1xf32>
      %18 = vector.extract %17[0, 0, 0] : f32 from vector<1x1x1xf32>
      %19 = vector.broadcast %18 : f32 to vector<8x128xf32>
      %c0_14 = arith.constant 0 : index
      %c0_15 = arith.constant 0 : index
      %20 = vector.load %arg7[%c0_14, %c0_15] : memref<8x128xf32, #tpu.memory_space<vmem>>, vector<8x128xf32>
      tpu.vector_store %arg7[%c0_14, %c0_15], %19 {strides = array<i32>} : memref<8x128xf32, #tpu.memory_space<vmem>>, vector<8x128xf32>,
    } else {
    }
    return
  }
  func.func @transform_0(%arg0: i32, %arg1: i32, %arg2: i32) -> (i32, i32) {
    %c0_i32 = arith.constant 0 : i32
    return %arg0, %arg2 : i32, i32
  }
  func.func @transform_1(%arg0: i32, %arg1: i32, %arg2: i32) -> (i32, i32) {
    %c0_i32 = arith.constant 0 : i32
    return %arg2, %arg1 : i32, i32
  }
  func.func @transform_2(%arg0: i32, %arg1: i32, %arg2: i32) -> (i32, i32) {
    %c0_i32 = arith.constant 0 : i32
    %c0_i32_0 = arith.constant 0 : i32
    return %c0_i32, %arg1 : i32, i32
  }
  func.func @transform_3(%arg0: i32, %arg1: i32, %arg2: i32) -> (i32, i32) {
    %c0_i32 = arith.constant 0 : i32
    return %arg0, %arg1 : i32, i32
  }
  func.func @transform_4(%arg0: i32, %arg1: i32, %arg2: i32) -> (i32, i32) {
    %c0_i32 = arith.constant 0 : i32
    return %arg0, %arg1 : i32, i32
  }
}

module attributes {stable_mosaic.version = 11 : i64} {
  func.func @_quantize_kernel(%arg0: i32, %arg1: i32, %arg2: memref<2xf32, #tpu.memory_space<smem>>, %arg3: memref<10x512xf32, #tpu.memory_space<vmem>>, %arg4: memref<10x512xf32, #tpu.memory_space<vmem>>) attributes {dimension_semantics = [#tpu.dimension_semantics<parallel>, #tpu.dimension_semantics<parallel>], iteration_bounds = array<i64: 1, 1>, scalar_prefetch = 0 : i64, scratch_operands = 0 : i64, tpu.core_type = #tpu.core_type<tc>, window_params = [{transform_indices = @transform_0, window_bounds = array<i64: 2>}, {transform_indices = @transform_1, window_bounds = array<i64: 10, 512>}, {transform_indices = @transform_2, window_bounds = array<i64: 10, 512>}]} {
    %c0 = arith.constant 0 : index
    %0 = memref.load %arg2[%c0] : memref<2xf32, #tpu.memory_space<smem>>
    %c1 = arith.constant 1 : index
    %1 = memref.load %arg2[%c1] : memref<2xf32, #tpu.memory_space<smem>>
    %c0_0 = arith.constant 0 : index
    %c0_1 = arith.constant 0 : index
    %2 = vector.load %arg3[%c0_0, %c0_1] : memref<10x512xf32, #tpu.memory_space<vmem>>, vector<10x512xf32>
    %3 = vector.broadcast %0 : f32 to vector<10x512xf32>
    %4 = arith.mulf %2, %3 : vector<10x512xf32>
    %5 = math.roundeven %4 : vector<10x512xf32>
    %6 = vector.broadcast %1 : f32 to vector<10x512xf32>
    %7 = arith.mulf %5, %6 : vector<10x512xf32>
    %c0_2 = arith.constant 0 : index
    %c0_3 = arith.constant 0 : index
    %8 = vector.load %arg4[%c0_2, %c0_3] : memref<10x512xf32, #tpu.memory_space<vmem>>, vector<10x512xf32>
    tpu.vector_store %arg4[%c0_2, %c0_3], %7 {strides = array<i32>} : memref<10x512xf32, #tpu.memory_space<vmem>>, vector<10x512xf32>,
    return
  }
  func.func @transform_0(%arg0: i32, %arg1: i32) -> i32 {
    %c0_i32 = arith.constant 0 : i32
    %c0_i32_0 = arith.constant 0 : i32
    return %c0_i32 : i32
  }
  func.func @transform_1(%arg0: i32, %arg1: i32) -> (i32, i32) {
    %c0_i32 = arith.constant 0 : i32
    return %arg0, %arg1 : i32, i32
  }
  func.func @transform_2(%arg0: i32, %arg1: i32) -> (i32, i32) {
    %c0_i32 = arith.constant 0 : i32
    return %arg0, %arg1 : i32, i32
  }
}

</mosaic_0001>

<llo_original>
// kernel: bitlinear_forward.3
$region0: #{bitlinear_forward.3}
  #allocation0 [shape = 'u32[]', space=smem, size = 0x4, offset = 0x4, fixed_abs, tag = 'smem constant byte address 0x4 - core index']
  #allocation1 [shape = 'u32[144,128]{1,0:T(1,128)}', space=vmem, size = 0x12000, scoped, tag = 'internal scratch']
  %s0 = inlined_call_operand.vmem [shape: f32[10,512], index: 0, kind: input, shape index: {}]
  %s1 = inlined_call_operand.vmem [shape: f32[1,512], index: 1, kind: input, shape index: {}]
  %s2 = inlined_call_operand.vmem [shape: f32[1,512], index: 2, kind: input, shape index: {}]
  %s3 = inlined_call_operand.vmem [shape: bf16[10,512], index: 3, kind: output, shape index: {}]
  %s4 = sld [smem:[#allocation0]]
  $region22: #{bitlinear_forward.3} parent=0
    _
  %s6 = ssub.s32 1, %s4
  %s7 = scalar_select 0, %s6, %s4
  // Predicated region
  $region2: #{bitlinear_forward.3} parent=0 // pred_check
    _
  $region3: #{bitlinear_forward.3} parent=0 // pred_check_branch
    %9 = sbr.rel (0) target = $region5
  $region4: #{bitlinear_forward.3} parent=0 // pred_region
    _
  $region5: #{bitlinear_forward.3} parent=0 // pred_fallthru
    _
  // Predicated region
  $region6: #{bitlinear_forward.3} parent=0 // pred_check
    _
  $region7: #{bitlinear_forward.3} parent=0 // pred_check_branch
    %11 = sbr.rel (0) target = $region9
  $region8: #{bitlinear_forward.3} parent=0 // pred_region
    _
  $region9: #{bitlinear_forward.3} parent=0 // pred_fallthru
    _
  // Predicated region
  $region10: #{bitlinear_forward.3} parent=0 // pred_check
    _
  $region11: #{bitlinear_forward.3} parent=0 // pred_check_branch
    %13 = sbr.rel (0) target = $region13
  $region12: #{bitlinear_forward.3} parent=0 // pred_region
    _
  $region13: #{bitlinear_forward.3} parent=0 // pred_fallthru
    _
  %v14 = vld [vmem:[%s0] sm:$0xff]
  %v15 = vld [vmem:[%s0 + $0x8] sm:$0xff]
  %v16 = vld [vmem:[%s0 + $0x10] sm:$0xff]
  %v17 = vld [vmem:[%s0 + $0x18] sm:$0xff]
  %v18 = vld [vmem:[%s0 + $0x20] sm:$0x3]
  %v19 = vld [vmem:[%s0 + $0x28] sm:$0x3]
  %v20 = vld [vmem:[%s0 + $0x30] sm:$0x3]
  %v21 = vld [vmem:[%s0 + $0x38] sm:$0x3]
  %v22 = vadd.f32 %v14, %v15
  %v23 = vadd.f32 %v22, %v16
  %v24 = vadd.f32 %v23, %v17
  %25 = vadd.xlane.f32.xlu0 %v24
  %v26 = vpop.xlane.xlu0 %25
  %vm27 = vcmask 1041408
  %v28 = vsel %vm27, %v18, 0.0
  %v29 = vsel %vm27, %v19, 0.0
  %v30 = vadd.f32 %v28, %v29
  %v31 = vsel %vm27, %v20, 0.0
  %v32 = vadd.f32 %v30, %v31
  %v33 = vsel %vm27, %v21, 0.0
  %v34 = vadd.f32 %v32, %v33
  %35 = vadd.xlane.f32.xlu0 %v34
  %v36 = vpop.xlane.xlu0 %35
  %v37 = vrcp.pop 512.0
  %v38 = vmul.f32 %v26, %v37
  %v39 = vmul.f32 %v36, %v37
  %v40 = vsub.f32 %v14, %v38
  %v41 = vsub.f32 %v15, %v38
  %v42 = vsub.f32 %v16, %v38
  %v43 = vsub.f32 %v17, %v38
  %v44 = vsub.f32 %v18, %v39
  %v45 = vsub.f32 %v19, %v39
  %v46 = vsub.f32 %v20, %v39
  %v47 = vsub.f32 %v21, %v39
  %v48 = vmul.f32 %v40, %v40
  %v49 = vmul.f32 %v41, %v41
  %v50 = vmul.f32 %v42, %v42
  %v51 = vmul.f32 %v43, %v43
  %v52 = vmul.f32 %v44, %v44
  %v53 = vmul.f32 %v45, %v45
  %v54 = vmul.f32 %v46, %v46
  %v55 = vmul.f32 %v47, %v47
  %v56 = vadd.f32 %v48, %v49
  %v57 = vadd.f32 %v56, %v50
  %v58 = vadd.f32 %v57, %v51
  %59 = vadd.xlane.f32.xlu0 %v58
  %v60 = vpop.xlane.xlu0 %59
  %v61 = vsel %vm27, %v52, 0.0
  %v62 = vsel %vm27, %v53, 0.0
  %v63 = vadd.f32 %v61, %v62
  %v64 = vsel %vm27, %v54, 0.0
  %v65 = vadd.f32 %v63, %v64
  %v66 = vsel %vm27, %v55, 0.0
  %v67 = vadd.f32 %v65, %v66
  %68 = vadd.xlane.f32.xlu0 %v67
  %v69 = vpop.xlane.xlu0 %68
  %v70 = vmul.f32 %v60, %v37
  %v71 = vmul.f32 %v69, %v37
  %v72 = vadd.f32 %v70, 1e-05
  %v73 = vadd.f32 %v71, 1e-05
  %v74 = vrsqrt.pop %v72
  %v75 = vrsqrt.pop %v73
  %v76 = vmul.f32 %v40, %v74
  %v77 = vmul.f32 %v41, %v74
  %v78 = vmul.f32 %v42, %v74
  %v79 = vmul.f32 %v43, %v74
  %v80 = vmul.f32 %v44, %v75
  %v81 = vmul.f32 %v45, %v75
  %v82 = vmul.f32 %v46, %v75
  %v83 = vmul.f32 %v47, %v75
  %v84 = vld [vmem:[%s1] sm:$0xf]
  %v86 = vlaneseq
  %v87 = vshrl.u32 %v86, 7
  %v88 = vsub.s32 0, %v87
  %v89 = vrot.slane %v84, %v88
  %v90 = vlaneseq
  %v91 = vshrl.u32 %v90, 7
  %v92 = vsub.s32 1, %v91
  %v93 = vrot.slane %v84, %v92
  %v94 = vlaneseq
  %v95 = vshrl.u32 %v94, 7
  %v96 = vsub.s32 2, %v95
  %v97 = vrot.slane %v84, %v96
  %v98 = vlaneseq
  %v99 = vshrl.u32 %v98, 7
  %v100 = vsub.s32 3, %v99
  %v101 = vrot.slane %v84, %v100
  %v106 = vmul.f32 %v76, %v89
  %v107 = vmul.f32 %v77, %v93
  %v108 = vmul.f32 %v78, %v97
  %v109 = vmul.f32 %v79, %v101
  %v110 = vmul.f32 %v80, %v89
  %v111 = vmul.f32 %v81, %v93
  %v112 = vmul.f32 %v82, %v97
  %v113 = vmul.f32 %v83, %v101
  %v114 = vld [vmem:[%s2] sm:$0xf]
  %v116 = vlaneseq
  %v117 = vshrl.u32 %v116, 7
  %v118 = vsub.s32 0, %v117
  %v119 = vrot.slane %v114, %v118
  %v120 = vlaneseq
  %v121 = vshrl.u32 %v120, 7
  %v122 = vsub.s32 1, %v121
  %v123 = vrot.slane %v114, %v122
  %v124 = vlaneseq
  %v125 = vshrl.u32 %v124, 7
  %v126 = vsub.s32 2, %v125
  %v127 = vrot.slane %v114, %v126
  %v128 = vlaneseq
  %v129 = vshrl.u32 %v128, 7
  %v130 = vsub.s32 3, %v129
  %v131 = vrot.slane %v114, %v130
  %v136 = vadd.f32 %v106, %v119
  %v137 = vadd.f32 %v107, %v123
  %v138 = vadd.f32 %v108, %v127
  %v139 = vadd.f32 %v109, %v131
  %v140 = vadd.f32 %v110, %v119
  %v141 = vadd.f32 %v111, %v123
  %v142 = vadd.f32 %v112, %v127
  %v143 = vadd.f32 %v113, %v131
  %v144 = vpack.c.bf16 %v140, %v136
  %v145 = vpack.c.bf16 %v141, %v137
  %v146 = vpack.c.bf16 %v142, %v138
  %v147 = vpack.c.bf16 %v143, %v139
  %v152 = vunpack.c.l.b16 %v144
  %v153 = vunpack.c.l.b16 %v145
  %v154 = vunpack.c.l.b16 %v146
  %v155 = vunpack.c.l.b16 %v147
  %v156 = vunpack.c.h.b16 %v144
  %v157 = vunpack.c.h.b16 %v145
  %v158 = vunpack.c.h.b16 %v146
  %v159 = vunpack.c.h.b16 %v147
  %v160 = vpack.c.b16 %v153, %v152
  %v161 = vpack.c.b16 %v155, %v154
  %v162 = vpack.c.b16 %v157, %v156
  %v163 = vpack.c.b16 %v159, %v158
  %168 = vst [vmem:[%s3] sm:$0xff] %v160
  %169 = vst [vmem:[%s3 + $0x8] sm:$0xff] %v161
  %170 = vst [vmem:[%s3 + $0x10] sm:$0x11] %v162
  %171 = vst [vmem:[%s3 + $0x18] sm:$0x11] %v163
  // Predicated region
  $region14: #{bitlinear_forward.3} parent=0 // pred_check
    _
  $region15: #{bitlinear_forward.3} parent=0 // pred_check_branch
    %173 = sbr.rel (0) target = $region17
  $region16: #{bitlinear_forward.3} parent=0 // pred_region
    _
  $region17: #{bitlinear_forward.3} parent=0 // pred_fallthru
    _
  // Predicated region
  $region18: #{bitlinear_forward.3} parent=0 // pred_check
    _
  $region19: #{bitlinear_forward.3} parent=0 // pred_check_branch
    %175 = sbr.rel (0) target = $region21
  $region20: #{bitlinear_forward.3} parent=0 // pred_region
    _
  $region21: #{bitlinear_forward.3} parent=0 // pred_fallthru
    _

// kernel: bitlinear_forward.5
$region0: #{bitlinear_forward.5}
  #allocation0 [shape = 'u32[]', space=smem, size = 0x4, offset = 0x4, fixed_abs, tag = 'smem constant byte address 0x4 - core index']
  #allocation1 [shape = 'u32[144,128]{1,0:T(1,128)}', space=vmem, size = 0x12000, scoped, tag = 'internal scratch']
  %s0 = inlined_call_operand.vmem [shape: f32[2], index: 0, kind: input, shape index: {}]
  %s1 = inlined_call_operand.vmem [shape: f32[10,512], index: 1, kind: input, shape index: {}]
  %s2 = inlined_call_operand.vmem [shape: f32[10,512], index: 2, kind: output, shape index: {}]
  %s3 = sld [smem:[#allocation0]]
  $region22: #{bitlinear_forward.5} parent=0
    _
  %s5 = ssub.s32 1, %s3
  %s6 = scalar_select 0, %s5, %s3
  $region1: #{bitlinear_forward.5} parent=0
    #allocation2 [shape = 'u8[512]{0}', space=smem, size = 0x200, scoped, tag = 'input window, operand 0, single buffered']
    #allocation3 [shape = 's32[1]{0}', space=sflag, size = 0x4, scoped, tag = 'scoped memory for bitlinear_forward.5']
    %7 = vsyncpa [#allocation3], 0
    // Predicated region
    $region2: #{bitlinear_forward.5} parent=1 // pred_check
      _
    $region3: #{bitlinear_forward.5} parent=1 // pred_check_branch
      %9 = sbr.rel (0) target = $region5
    $region4: #{bitlinear_forward.5} parent=1 // pred_region
      %s11 = ssub.s32 16, 16
      %12 = vsyncadd [#allocation3], %s11
      %s14 = sshll.u32 %s0, 4
      %s15 = int_to_ptr.vmem [resolvable:$true] %s14
      %17 = dma.vmem_to_smem %s15, 16, [#allocation2], [#allocation3]
    $region5: #{bitlinear_forward.5} parent=1 // pred_fallthru
      _
    // Predicated region
    $region6: #{bitlinear_forward.5} parent=1 // pred_check
      _
    $region7: #{bitlinear_forward.5} parent=1 // pred_check_branch
      %19 = sbr.rel (0) target = $region9
    $region8: #{bitlinear_forward.5} parent=1 // pred_region
      _
    $region9: #{bitlinear_forward.5} parent=1 // pred_fallthru
      _
    // Predicated region
    $region10: #{bitlinear_forward.5} parent=1 // pred_check
      _
    $region11: #{bitlinear_forward.5} parent=1 // pred_check_branch
      %21 = sbr.rel (0) target = $region13
    $region12: #{bitlinear_forward.5} parent=1 // pred_region
      %22 = dma.done [#allocation3], 16
    $region13: #{bitlinear_forward.5} parent=1 // pred_fallthru
      _
    %23 = sfence
    %s24 = sld [smem:[#allocation2]]
    %s25 = sld [smem:[#allocation2 + $0x1]]
    %v26 = vld [vmem:[%s1] sm:$0xff]
    %v27 = vld [vmem:[%s1 + $0x8] sm:$0xff]
    %v28 = vld [vmem:[%s1 + $0x10] sm:$0xff]
    %v29 = vld [vmem:[%s1 + $0x18] sm:$0xff]
    %v30 = vld [vmem:[%s1 + $0x20] sm:$0x3]
    %v31 = vld [vmem:[%s1 + $0x28] sm:$0x3]
    %v32 = vld [vmem:[%s1 + $0x30] sm:$0x3]
    %v33 = vld [vmem:[%s1 + $0x38] sm:$0x3]
    %v34 = vstv %s24
    %v35 = vmul.f32 %v26, %v34
    %v36 = vmul.f32 %v27, %v34
    %v37 = vmul.f32 %v28, %v34
    %v38 = vmul.f32 %v29, %v34
    %v39 = vmul.f32 %v30, %v34
    %v40 = vmul.f32 %v31, %v34
    %v41 = vmul.f32 %v32, %v34
    %v42 = vmul.f32 %v33, %v34
    %v43 = vround.ne.pseudo %v35
    %v44 = vround.ne.pseudo %v36
    %v45 = vround.ne.pseudo %v37
    %v46 = vround.ne.pseudo %v38
    %v47 = vround.ne.pseudo %v39
    %v48 = vround.ne.pseudo %v40
    %v49 = vround.ne.pseudo %v41
    %v50 = vround.ne.pseudo %v42
    %v51 = vstv %s25
    %v52 = vmul.f32 %v43, %v51
    %v53 = vmul.f32 %v44, %v51
    %v54 = vmul.f32 %v45, %v51
    %v55 = vmul.f32 %v46, %v51
    %v56 = vmul.f32 %v47, %v51
    %v57 = vmul.f32 %v48, %v51
    %v58 = vmul.f32 %v49, %v51
    %v59 = vmul.f32 %v50, %v51
    %60 = vst [vmem:[%s2] sm:$0xff] %v52
    %61 = vst [vmem:[%s2 + $0x8] sm:$0xff] %v53
    %62 = vst [vmem:[%s2 + $0x10] sm:$0xff] %v54
    %63 = vst [vmem:[%s2 + $0x18] sm:$0xff] %v55
    %64 = vst [vmem:[%s2 + $0x20] sm:$0x3] %v56
    %65 = vst [vmem:[%s2 + $0x28] sm:$0x3] %v57
    %66 = vst [vmem:[%s2 + $0x30] sm:$0x3] %v58
    %67 = vst [vmem:[%s2 + $0x38] sm:$0x3] %v59
    // Predicated region
    $region14: #{bitlinear_forward.5} parent=1 // pred_check
      _
    $region15: #{bitlinear_forward.5} parent=1 // pred_check_branch
      %69 = sbr.rel (0) target = $region17
    $region16: #{bitlinear_forward.5} parent=1 // pred_region
      _
    $region17: #{bitlinear_forward.5} parent=1 // pred_fallthru
      _
    // Predicated region
    $region18: #{bitlinear_forward.5} parent=1 // pred_check
      _
    $region19: #{bitlinear_forward.5} parent=1 // pred_check_branch
      %71 = sbr.rel (0) target = $region21
    $region20: #{bitlinear_forward.5} parent=1 // pred_region
      _
    $region21: #{bitlinear_forward.5} parent=1 // pred_fallthru
      _
    %72 = vsyncpa [#allocation3], 1

// kernel: bitlinear_forward.4
$region0: #{bitlinear_forward.4}
  #allocation0 [shape = 'u32[]', space=smem, size = 0x4, offset = 0x4, fixed_abs, tag = 'smem constant byte address 0x4 - core index']
  #allocation1 [shape = 'u32[144,128]{1,0:T(1,128)}', space=vmem, size = 0x12000, scoped, tag = 'internal scratch']
  #allocation2 [shape = 'f32[10,256]{1,0:T(8,128)}', space=vmem, size = 0x4000, scoped, tag = 'scratch operand']
  %s0 = inlined_call_operand.vmem [shape: bf16[10,512], index: 0, kind: input, shape index: {}]
  %s1 = inlined_call_operand.hbm [shape: bf16[512,512], index: 1, kind: input, shape index: {}]
  %s2 = inlined_call_operand.vmem [shape: f32[1,512], index: 2, kind: input, shape index: {}]
  %s3 = inlined_call_operand.vmem [shape: f32[10,512], index: 3, kind: output, shape index: {0}]
  %s4 = inlined_call_operand.vmem [shape: f32[8,256], index: 4, kind: output, shape index: {1}]
  %5 = xla_tuple %s3, %s4
  %s6 = sld [smem:[#allocation0]]
  $region122: #{bitlinear_forward.4} parent=0
    _
  %s8 = ssub.s32 1, %s6
  %s9 = scalar_select 0, %s8, %s6
  $region1: #{bitlinear_forward.4} parent=0
    #allocation3 [shape = 'u8[16384]{0}', space=vmem, size = 0x4000, scoped, tag = 'input window, operand 0']
    #allocation4 [shape = 'u8[262144]{0}', space=vmem, size = 0x40000, scoped, tag = 'input window, operand 1']
    #allocation5 [shape = 's32[2]{0}', space=sflag, size = 0x8, scoped, tag = 'scoped memory for bitlinear_forward.4']
    #allocation6 [shape = 'u8[32768]{0}', space=vmem, size = 0x8000, scoped, tag = 'output window, operand 0']
    %10 = vsyncpa [#allocation5], 0
    %s11 = scalar_lea.sflag [#allocation5], 1
    %12 = vsyncpa %s11, 0
    loop: start=0, step=1, limit=6
    $region2: #{bitlinear_forward.4} parent=1 // loop_pre_header
      _
    $region3: #{bitlinear_forward.4} parent=1 // loop_header
      %s14 = sphi 0, %s18
      %p15 = scmp.ge.s32.totalorder %s14, 6
      %s21 = sphi 0, %s40
      %s22 = sphi 0, %s36
      %s23 = sphi 0, %s32
      %s24 = sphi 0, %s21
      %s25 = sphi 0, %s22
      %s26 = sphi 0, %s23
      %s27 = sphi 0, %s24
      %s28 = sphi 0, %s25
      %s29 = sphi 0, %s26
      %s45 = sphi 0, %s47
      %s48 = sphi 0, %s45
      %s49 = sphi 0, %s48
      %s65 = sphi 0, %s49
      %s73 = sphi 0, %s75
      %s76 = sphi 0, %s73
      %s77 = sphi 0, %s76
      %s93 = sphi 0, %s77
      %s99 = sphi 0, %s101
      %s102 = sphi 0, %s99
      %s103 = sphi 0, %s102
      %s119 = sphi 0, %s103
      %s127 = sphi 0, %s129
      %s130 = sphi 0, %s127
      %s131 = sphi 0, %s130
      %s147 = sphi 0, %s131
      %s155 = sphi 0, %s157
      %s158 = sphi 0, %s155
      %s159 = sphi 0, %s158
      %s175 = sphi 0, %s159
    $region4: #{bitlinear_forward.4} parent=1 // loop_header_branch
      %17 = sbr.rel (%p15) target = $region8
    $region5: #{bitlinear_forward.4} parent=1 // loop_body
      %s19 = ssub.s32 %s14, 1
      %s20 = ssub.s32 %s14, 2
      %s30 = sadd.s32 1, %s23
      %p31 = scmp.ge.s32.totalorder %s30, 2
      %s32 = scalar_select %p31, 0, %s30
      %s33 = sadd.s32 1, %s22
      %s34 = scalar_select %p31, %s33, %s22
      %p35 = scmp.ge.s32.totalorder %s34, 2
      %s36 = scalar_select %p35, 0, %s34
      %s37 = sadd.s32 1, %s21
      %s38 = scalar_select %p35, %s37, %s21
      %p39 = scmp.ge.s32.totalorder %s38, 1
      %s40 = scalar_select %p39, 0, %s38
      %s41 = ssub.s32 %s21, %s40
      %s42 = ssub.s32 %s23, %s32
      %s43 = sor.u32 %s41, %s42
      %p44 = scmp.eq.s32.totalorder %s43, 0
      %s46 = sadd.s32 %s45, 1
      %s47 = scalar_select %p44, %s45, %s46
      %p50 = pneg %p44
      %p51 = scmp.eq.s32.totalorder %s14, 3
      %p52 = por %p50, %p51
      %p53 = scmp.ne.s32.totalorder %s45, %s48
      %p54 = scmp.eq.s32.totalorder %s14, 0
      %p55 = por %p53, %p54
      %p56 = scmp.ne.s32.totalorder %s45, %s48
      %p57 = scmp.eq.s32.totalorder %s19, 3
      %p58 = por %p56, %p57
      %p59 = scmp.ne.s32.totalorder %s48, %s49
      %p60 = scmp.eq.s32.totalorder %s19, 0
      %p61 = por %p59, %p60
      %p62 = scmp.ne.s32.totalorder %s48, %s49
      %p63 = scmp.eq.s32.totalorder %s20, 3
      %p64 = por %p62, %p63
      %p66 = scmp.ne.s32.totalorder %s49, %s65
      %p67 = scmp.eq.s32.totalorder %s20, 0
      %p68 = por %p66, %p67
      %s69 = ssub.s32 %s23, %s32
      %s70 = ssub.s32 %s22, %s36
      %s71 = sor.u32 %s69, %s70
      %p72 = scmp.eq.s32.totalorder %s71, 0
      %s74 = sadd.s32 %s73, 1
      %s75 = scalar_select %p72, %s73, %s74
      %p78 = pneg %p72
      %p79 = scmp.eq.s32.totalorder %s14, 3
      %p80 = por %p78, %p79
      %p81 = scmp.ne.s32.totalorder %s73, %s76
      %p82 = scmp.eq.s32.totalorder %s14, 0
      %p83 = por %p81, %p82
      %p84 = scmp.ne.s32.totalorder %s73, %s76
      %p85 = scmp.eq.s32.totalorder %s19, 3
      %p86 = por %p84, %p85
      %p87 = scmp.ne.s32.totalorder %s76, %s77
      %p88 = scmp.eq.s32.totalorder %s19, 0
      %p89 = por %p87, %p88
      %p90 = scmp.ne.s32.totalorder %s76, %s77
      %p91 = scmp.eq.s32.totalorder %s20, 3
      %p92 = por %p90, %p91
      %p94 = scmp.ne.s32.totalorder %s77, %s93
      %p95 = scmp.eq.s32.totalorder %s20, 0
      %p96 = por %p94, %p95
      %s97 = ssub.s32 %s22, %s36
      %p98 = scmp.eq.s32.totalorder %s97, 0
      %s100 = sadd.s32 %s99, 1
      %s101 = scalar_select %p98, %s99, %s100
      %p104 = pneg %p98
      %p105 = scmp.eq.s32.totalorder %s14, 3
      %p106 = por %p104, %p105
      %p107 = scmp.ne.s32.totalorder %s99, %s102
      %p108 = scmp.eq.s32.totalorder %s14, 0
      %p109 = por %p107, %p108
      %p110 = scmp.ne.s32.totalorder %s99, %s102
      %p111 = scmp.eq.s32.totalorder %s19, 3
      %p112 = por %p110, %p111
      %p113 = scmp.ne.s32.totalorder %s102, %s103
      %p114 = scmp.eq.s32.totalorder %s19, 0
      %p115 = por %p113, %p114
      %p116 = scmp.ne.s32.totalorder %s102, %s103
      %p117 = scmp.eq.s32.totalorder %s20, 3
      %p118 = por %p116, %p117
      %p120 = scmp.ne.s32.totalorder %s103, %s119
      %p121 = scmp.eq.s32.totalorder %s20, 0
      %p122 = por %p120, %p121
      %s123 = ssub.s32 %s21, %s40
      %s124 = ssub.s32 %s22, %s36
      %s125 = sor.u32 %s123, %s124
      %p126 = scmp.eq.s32.totalorder %s125, 0
      %s128 = sadd.s32 %s127, 1
      %s129 = scalar_select %p126, %s127, %s128
      %p132 = pneg %p126
      %p133 = scmp.eq.s32.totalorder %s14, 3
      %p134 = por %p132, %p133
      %p135 = scmp.ne.s32.totalorder %s127, %s130
      %p136 = scmp.eq.s32.totalorder %s14, 0
      %p137 = por %p135, %p136
      %p138 = scmp.ne.s32.totalorder %s127, %s130
      %p139 = scmp.eq.s32.totalorder %s19, 3
      %p140 = por %p138, %p139
      %p141 = scmp.ne.s32.totalorder %s130, %s131
      %p142 = scmp.eq.s32.totalorder %s19, 0
      %p143 = por %p141, %p142
      %p144 = scmp.ne.s32.totalorder %s130, %s131
      %p145 = scmp.eq.s32.totalorder %s20, 3
      %p146 = por %p144, %p145
      %p148 = scmp.ne.s32.totalorder %s131, %s147
      %p149 = scmp.eq.s32.totalorder %s20, 0
      %p150 = por %p148, %p149
      %s151 = ssub.s32 %s21, %s40
      %s152 = ssub.s32 %s22, %s36
      %s153 = sor.u32 %s151, %s152
      %p154 = scmp.eq.s32.totalorder %s153, 0
      %s156 = sadd.s32 %s155, 1
      %s157 = scalar_select %p154, %s155, %s156
      %p160 = pneg %p154
      %p161 = scmp.eq.s32.totalorder %s14, 3
      %p162 = por %p160, %p161
      %p163 = scmp.ne.s32.totalorder %s155, %s158
      %p164 = scmp.eq.s32.totalorder %s14, 0
      %p165 = por %p163, %p164
      %p166 = scmp.ne.s32.totalorder %s155, %s158
      %p167 = scmp.eq.s32.totalorder %s19, 3
      %p168 = por %p166, %p167
      %p169 = scmp.ne.s32.totalorder %s158, %s159
      %p170 = scmp.eq.s32.totalorder %s19, 0
      %p171 = por %p169, %p170
      %p172 = scmp.ne.s32.totalorder %s158, %s159
      %p173 = scmp.eq.s32.totalorder %s20, 3
      %p174 = por %p172, %p173
      %p176 = scmp.ne.s32.totalorder %s159, %s175
      %p177 = scmp.eq.s32.totalorder %s20, 0
      %p178 = por %p176, %p177
      %p179 = scmp.le.s32.totalorder 1, %s14
      %p180 = scmp.lt.s32.totalorder %s14, 5
      %p181 = pnand %p179, %p180
      %p182 = pneg %p181
      // Predicated region
      $region9: #{bitlinear_forward.4} parent=5 // pred_check
        _
      $region10: #{bitlinear_forward.4} parent=5 // pred_check_branch
        %184 = sbr.rel (%p181) target = $region12
      $region11: #{bitlinear_forward.4} parent=5 // pred_region
        %s185 = ssub.s32 %s14, 1
      $region12: #{bitlinear_forward.4} parent=5 // pred_fallthru
        _
      %p186 = scmp.lt.s32.totalorder %s14, 4
      // Predicated region
      $region13: #{bitlinear_forward.4} parent=5 // pred_check
        %p187 = pneg %p186
      $region14: #{bitlinear_forward.4} parent=5 // pred_check_branch
        %189 = sbr.rel (%p187) target = $region16
      $region15: #{bitlinear_forward.4} parent=5 // pred_region
        // Predicated region
        $region17: #{bitlinear_forward.4} parent=15 // pred_check
          %p190 = pneg %p55
        $region18: #{bitlinear_forward.4} parent=15 // pred_check_branch
          %192 = sbr.rel (%p190) target = $region20
        $region19: #{bitlinear_forward.4} parent=15 // pred_region
          %s193 = sand.u32 %s45, 1
          %s194 = sand.u32 %s45, 1
          %s195 = smul.addr %s194, 16
          %s196 = scalar_lea.vmem [#allocation3], %s195
          %s197 = smul.u32 2, %s21
          %s198 = smul.u32 2, %s23
          %s199 = smul.addr %s197, 4
          %s200 = sadd.s32 %s198, %s199
          %s201 = smul.addr %s200, 4
          %s202 = scalar_lea.vmem %s0, %s201
          // Predicated region
          $region21: #{bitlinear_forward.4} parent=19 // pred_check
            _
          $region22: #{bitlinear_forward.4} parent=19 // pred_check_branch
            %204 = sbr.rel (0) target = $region24
          $region23: #{bitlinear_forward.4} parent=19 // pred_region
            // Predicated region
            $region25: #{bitlinear_forward.4} parent=23 // pred_check
              _
            $region26: #{bitlinear_forward.4} parent=23 // pred_check_branch
              %206 = sbr.rel (0) target = $region28
            $region27: #{bitlinear_forward.4} parent=23 // pred_region
              // Predicated region
              $region40: #{bitlinear_forward.4} parent=27 // pred_check
                _
              $region41: #{bitlinear_forward.4} parent=27 // pred_check_branch
                %223 = sbr.rel (0) target = $region43
              $region42: #{bitlinear_forward.4} parent=27 // pred_region
                loop: start=0, step=1, limit=1
                $region44: #{bitlinear_forward.4} parent=42 // loop_pre_header
                  _
                $region45: #{bitlinear_forward.4} parent=42 // loop_header
                  %s225 = sphi 0, %s229
                  %p226 = scmp.ge.s32.totalorder %s225, 1
                  %s230 = sphi %s202, %s202
                  %s231 = sphi %s196, %s196
                $region46: #{bitlinear_forward.4} parent=42 // loop_header_branch
                  %228 = sbr.rel (%p226) target = $region50
                $region47: #{bitlinear_forward.4} parent=42 // loop_body
                  %v232 = vld [vmem:[%s230] sm:$0xff]
                  %233 = vst [vmem:[%s231] sm:$0xff] %v232
                  %v234 = vld [vmem:[%s230 + $0x10] sm:$0xff]
                  %235 = vst [vmem:[%s231 + $0x8] sm:$0xff] %v234
                $region48: #{bitlinear_forward.4} parent=42 // loop_footer
                  %s229 = sadd.s32 1, %s225
                $region49: #{bitlinear_forward.4} parent=42 // loop_footer_branch
                  %224 = sbr.rel target = $region45
                $region50: #{bitlinear_forward.4} parent=42 // loop_exit
                  _
              $region43: #{bitlinear_forward.4} parent=27 // pred_fallthru
                _
              // Predicated region
              $region51: #{bitlinear_forward.4} parent=27 // pred_check
                _
              $region52: #{bitlinear_forward.4} parent=27 // pred_check_branch
                %237 = sbr.rel target = $region54
              $region53: #{bitlinear_forward.4} parent=27 // pred_region
                _
              $region54: #{bitlinear_forward.4} parent=27 // pred_fallthru
                _
            $region28: #{bitlinear_forward.4} parent=23 // pred_fallthru
              _
            // Predicated region
            $region29: #{bitlinear_forward.4} parent=23 // pred_check
              _
            $region30: #{bitlinear_forward.4} parent=23 // pred_check_branch
              %208 = sbr.rel target = $region32
            $region31: #{bitlinear_forward.4} parent=23 // pred_region
              loop: start=0, step=1, limit=1
              $region33: #{bitlinear_forward.4} parent=31 // loop_pre_header
                _
              $region34: #{bitlinear_forward.4} parent=31 // loop_header
                %s211 = sphi 0, %s215
                %p212 = scmp.ge.s32.totalorder %s211, 1
                %s216 = sphi %s202, %s202
                %s217 = sphi %s196, %s196
              $region35: #{bitlinear_forward.4} parent=31 // loop_header_branch
                %214 = sbr.rel (%p212) target = $region39
              $region36: #{bitlinear_forward.4} parent=31 // loop_body
                %v218 = vld [vmem:[%s216] sm:$0xff]
                %219 = vst [vmem:[%s217] sm:$0xff] %v218
                %v220 = vld [vmem:[%s216 + $0x10] sm:$0xff]
                %221 = vst [vmem:[%s217 + $0x8] sm:$0xff] %v220
              $region37: #{bitlinear_forward.4} parent=31 // loop_footer
                %s215 = sadd.s32 1, %s211
              $region38: #{bitlinear_forward.4} parent=31 // loop_footer_branch
                %210 = sbr.rel target = $region34
              $region39: #{bitlinear_forward.4} parent=31 // loop_exit
                _
            $region32: #{bitlinear_forward.4} parent=23 // pred_fallthru
              _
          $region24: #{bitlinear_forward.4} parent=19 // pred_fallthru
            _
          %238 = vnop
        $region20: #{bitlinear_forward.4} parent=15 // pred_fallthru
          _
        // Predicated region
        $region55: #{bitlinear_forward.4} parent=15 // pred_check
          %p239 = pneg %p83
        $region56: #{bitlinear_forward.4} parent=15 // pred_check_branch
          %241 = sbr.rel (%p239) target = $region58
        $region57: #{bitlinear_forward.4} parent=15 // pred_region
          %s242 = sand.u32 %s73, 1
          %s243 = scalar_lea.sflag [#allocation5], %s242
          %s244 = sand.u32 %s73, 1
          %s245 = smul.addr %s244, 256
          %s246 = scalar_lea.vmem [#allocation4], %s245
          %s247 = smul.u32 32, %s23
          %s248 = smul.u32 2, %s22
          %s250 = ssub.s32 4096, 4096
          %251 = vsyncadd %s243, %s250
          %s252 = smul.addr %s247, 4
          %s253 = sadd.s32 %s248, %s252
          %s254 = smul.addr %s253, 64
          %s255 = scalar_lea.hbm %s1, %s254
          %s256 = sshll.u32 %s246, 4
          %s257 = int_to_ptr.vmem [resolvable:$true] %s256
          %262 = dma.hbm_to_vmem [thread:$0]  %s255, 4096, %s257, %s243, 256, 128, 8
        $region58: #{bitlinear_forward.4} parent=15 // pred_fallthru
          _
        // Predicated region
        $region59: #{bitlinear_forward.4} parent=15 // pred_check
          %p263 = pneg %p109
        $region60: #{bitlinear_forward.4} parent=15 // pred_check_branch
          %265 = sbr.rel (%p263) target = $region62
        $region61: #{bitlinear_forward.4} parent=15 // pred_region
          %s266 = smul.u32 2, %s22
          %p267 = scmp.lt.s32.totalorder %s266, 3
          %s268 = scalar_select %p267, %s266, 3
          %s269 = scalar_lea.vmem %s2, %s268
          %s270 = smul.u32 2, %s22
        $region62: #{bitlinear_forward.4} parent=15 // pred_fallthru
          _
      $region16: #{bitlinear_forward.4} parent=5 // pred_fallthru
        _
      %p271 = scmp.le.s32.totalorder 1, %s14
      %p272 = scmp.lt.s32.totalorder %s14, 5
      %p273 = pnand %p271, %p272
      %p274 = pneg %p273
      // Predicated region
      $region63: #{bitlinear_forward.4} parent=5 // pred_check
        _
      $region64: #{bitlinear_forward.4} parent=5 // pred_check_branch
        %276 = sbr.rel (%p273) target = $region66
      $region65: #{bitlinear_forward.4} parent=5 // pred_region
        %s277 = ssub.s32 %s14, 1
        %s278 = sand.u32 %s48, 1
        %s279 = sand.u32 %s48, 1
        %s280 = smul.addr %s279, 16
        %s281 = scalar_lea.vmem [#allocation3], %s280
        // Predicated region
        $region67: #{bitlinear_forward.4} parent=65 // pred_check
          %p282 = pneg %p61
        $region68: #{bitlinear_forward.4} parent=65 // pred_check_branch
          %284 = sbr.rel (%p282) target = $region70
        $region69: #{bitlinear_forward.4} parent=65 // pred_region
          _
        $region70: #{bitlinear_forward.4} parent=65 // pred_fallthru
          _
        %s285 = sand.u32 %s76, 1
        %s286 = scalar_lea.sflag [#allocation5], %s285
        %s287 = sand.u32 %s76, 1
        %s288 = smul.addr %s287, 256
        %s289 = scalar_lea.vmem [#allocation4], %s288
        // Predicated region
        $region71: #{bitlinear_forward.4} parent=65 // pred_check
          %p290 = pneg %p89
        $region72: #{bitlinear_forward.4} parent=65 // pred_check_branch
          %292 = sbr.rel (%p290) target = $region74
        $region73: #{bitlinear_forward.4} parent=65 // pred_region
          %293 = dma.done %s286, 4096
        $region74: #{bitlinear_forward.4} parent=65 // pred_fallthru
          _
        %s294 = sand.u32 %s48, 1
        %s295 = sand.u32 %s48, 1
        %s296 = smul.addr %s295, 16
        %s297 = scalar_lea.vmem [#allocation3], %s296
        %p298 = pneg %p61
        %p299 = pneg %p58
        %s300 = sand.u32 %s76, 1
        %s301 = scalar_lea.sflag [#allocation5], %s300
        %s302 = sand.u32 %s76, 1
        %s303 = smul.addr %s302, 256
        %s304 = scalar_lea.vmem [#allocation4], %s303
        %p305 = pneg %p89
        %p306 = pneg %p86
        %s307 = smul.u32 2, %s25
        %p308 = scmp.lt.s32.totalorder %s307, 3
        %s309 = scalar_select %p308, %s307, 3
        %s310 = scalar_lea.vmem %s2, %s309
        %p311 = pneg %p115
        %p312 = pneg %p112
        %p313 = pneg %p143
        %p314 = pneg %p140
        %s315 = sand.u32 %s130, 1
        %s316 = sand.u32 %s130, 1
        %s317 = smul.addr %s316, 32
        %s318 = scalar_lea.vmem [#allocation6], %s317
        %p319 = pneg %p171
        %p320 = pneg %p168
        %p321 = scmp.lt.s32.totalorder %s24, 0
        %s322 = scalar_select %p321, %s24, 0
        %p323 = scmp.lt.s32.totalorder %s25, 1
        %s324 = scalar_select %p323, %s25, 1
        %s325 = smul.addr %s322, 2
        %s326 = sadd.s32 %s324, %s325
        %s327 = smul.addr %s326, 8
        %s328 = scalar_lea.vmem %s4, %s327
        %s329 = smul.u32 2, %s24
        %s330 = smul.u32 2, %s26
        %s331 = smul.u32 32, %s26
        %s332 = smul.u32 2, %s25
        %s333 = smul.u32 2, %s25
        %p334 = scmp.lt.s32.totalorder %s333, 3
        %s335 = scalar_select %p334, %s333, 3
        %s336 = scalar_lea.vmem %s2, %s335
        %s337 = smul.u32 2, %s25
        %s338 = smul.u32 2, %s24
        %s339 = smul.u32 2, %s25
        %p340 = scmp.lt.s32.totalorder %s24, 0
        %s341 = scalar_select %p340, %s24, 0
        %p342 = scmp.lt.s32.totalorder %s25, 1
        %s343 = scalar_select %p342, %s25, 1
        %s344 = smul.addr %s341, 2
        %s345 = sadd.s32 %s343, %s344
        %s346 = smul.addr %s345, 8
        %s347 = scalar_lea.vmem %s4, %s346
        %p348 = scmp.eq.s32.totalorder %s26, 0
        // Predicated region
        $region75: #{bitlinear_forward.4} parent=65 // pred_check
          %p349 = pneg %p348
        $region76: #{bitlinear_forward.4} parent=65 // pred_check_branch
          %351 = sbr.rel (%p349) target = $region78
        $region77: #{bitlinear_forward.4} parent=65 // pred_region
          %v352 = vld [vmem:[%s336] sm:$0x3]
          %v354 = vlaneseq
          %v355 = vshrl.u32 %v354, 7
          %v356 = vsub.s32 0, %v355
          %v357 = vrot.slane %v352, %v356
          %v358 = vlaneseq
          %v359 = vshrl.u32 %v358, 7
          %v360 = vsub.s32 1, %v359
          %v361 = vrot.slane %v352, %v360
          %364 = vst [vmem:[#allocation2] sm:$0xff] %v357
          %365 = vst [vmem:[#allocation2 + $0x8] sm:$0xff] %v361
          %366 = vst [vmem:[#allocation2 + $0x10] sm:$0x3] %v357
          %367 = vst [vmem:[#allocation2 + $0x18] sm:$0x3] %v361
        $region78: #{bitlinear_forward.4} parent=65 // pred_fallthru
          _
        %v368 = vld [vmem:[#allocation2] sm:$0xff]
        %v369 = vld [vmem:[#allocation2 + $0x8] sm:$0xff]
        %v370 = vld [vmem:[#allocation2 + $0x10] sm:$0x3]
        %v371 = vld [vmem:[#allocation2 + $0x18] sm:$0x3]
        %v372 = vld [vmem:[%s281] sm:$0xff]
        %v373 = vld [vmem:[%s281 + $0x8] sm:$0x11]
        %v374 = vld [vmem:[%s289] sm:$0xff]
        %v375 = vld [vmem:[%s289 + $0x8] sm:$0xff]
        %v376 = vld [vmem:[%s289 + $0x10] sm:$0xff]
        %v377 = vld [vmem:[%s289 + $0x18] sm:$0xff]
        %v378 = vld [vmem:[%s289 + $0x20] sm:$0xff]
        %v379 = vld [vmem:[%s289 + $0x28] sm:$0xff]
        %v380 = vld [vmem:[%s289 + $0x30] sm:$0xff]
        %v381 = vld [vmem:[%s289 + $0x38] sm:$0xff]
        %v382 = vld [vmem:[%s289 + $0x40] sm:$0xff]
        %v383 = vld [vmem:[%s289 + $0x48] sm:$0xff]
        %v384 = vld [vmem:[%s289 + $0x50] sm:$0xff]
        %v385 = vld [vmem:[%s289 + $0x58] sm:$0xff]
        %v386 = vld [vmem:[%s289 + $0x60] sm:$0xff]
        %v387 = vld [vmem:[%s289 + $0x68] sm:$0xff]
        %v388 = vld [vmem:[%s289 + $0x70] sm:$0xff]
        %v389 = vld [vmem:[%s289 + $0x78] sm:$0xff]
        %v390 = vld [vmem:[%s289 + $0x80] sm:$0xff]
        %v391 = vld [vmem:[%s289 + $0x88] sm:$0xff]
        %v392 = vld [vmem:[%s289 + $0x90] sm:$0xff]
        %v393 = vld [vmem:[%s289 + $0x98] sm:$0xff]
        %v394 = vld [vmem:[%s289 + $0xa0] sm:$0xff]
        %v395 = vld [vmem:[%s289 + $0xa8] sm:$0xff]
        %v396 = vld [vmem:[%s289 + $0xb0] sm:$0xff]
        %v397 = vld [vmem:[%s289 + $0xb8] sm:$0xff]
        %v398 = vld [vmem:[%s289 + $0xc0] sm:$0xff]
        %v399 = vld [vmem:[%s289 + $0xc8] sm:$0xff]
        %v400 = vld [vmem:[%s289 + $0xd0] sm:$0xff]
        %v401 = vld [vmem:[%s289 + $0xd8] sm:$0xff]
        %v402 = vld [vmem:[%s289 + $0xe0] sm:$0xff]
        %v403 = vld [vmem:[%s289 + $0xe8] sm:$0xff]
        %v404 = vld [vmem:[%s289 + $0xf0] sm:$0xff]
        %v405 = vld [vmem:[%s289 + $0xf8] sm:$0xff]
        %v408 = vunpack.c.l.b16 %v372
        %v409 = vunpack.c.h.b16 %v372
        %v410 = vunpack.c.l.b16 %v373
        %v411 = vunpack.c.h.b16 %v373
        %v412 = vpack.c.b16 %v410, %v408
        %v413 = vpack.c.b16 %v411, %v409
        %v448 = vunpack.c.l.b16 %v374
        %v449 = vunpack.c.h.b16 %v374
        %v450 = vunpack.c.l.b16 %v375
        %v451 = vunpack.c.h.b16 %v375
        %v452 = vunpack.c.l.b16 %v376
        %v453 = vunpack.c.h.b16 %v376
        %v454 = vunpack.c.l.b16 %v377
        %v455 = vunpack.c.h.b16 %v377
        %v456 = vunpack.c.l.b16 %v378
        %v457 = vunpack.c.h.b16 %v378
        %v458 = vunpack.c.l.b16 %v379
        %v459 = vunpack.c.h.b16 %v379
        %v460 = vunpack.c.l.b16 %v380
        %v461 = vunpack.c.h.b16 %v380
        %v462 = vunpack.c.l.b16 %v381
        %v463 = vunpack.c.h.b16 %v381
        %v464 = vunpack.c.l.b16 %v382
        %v465 = vunpack.c.h.b16 %v382
        %v466 = vunpack.c.l.b16 %v383
        %v467 = vunpack.c.h.b16 %v383
        %v468 = vunpack.c.l.b16 %v384
        %v469 = vunpack.c.h.b16 %v384
        %v470 = vunpack.c.l.b16 %v385
        %v471 = vunpack.c.h.b16 %v385
        %v472 = vunpack.c.l.b16 %v386
        %v473 = vunpack.c.h.b16 %v386
        %v474 = vunpack.c.l.b16 %v387
        %v475 = vunpack.c.h.b16 %v387
        %v476 = vunpack.c.l.b16 %v388
        %v477 = vunpack.c.h.b16 %v388
        %v478 = vunpack.c.l.b16 %v389
        %v479 = vunpack.c.h.b16 %v389
        %v480 = vunpack.c.l.b16 %v390
        %v481 = vunpack.c.h.b16 %v390
        %v482 = vunpack.c.l.b16 %v391
        %v483 = vunpack.c.h.b16 %v391
        %v484 = vunpack.c.l.b16 %v392
        %v485 = vunpack.c.h.b16 %v392
        %v486 = vunpack.c.l.b16 %v393
        %v487 = vunpack.c.h.b16 %v393
        %v488 = vunpack.c.l.b16 %v394
        %v489 = vunpack.c.h.b16 %v394
        %v490 = vunpack.c.l.b16 %v395
        %v491 = vunpack.c.h.b16 %v395
        %v492 = vunpack.c.l.b16 %v396
        %v493 = vunpack.c.h.b16 %v396
        %v494 = vunpack.c.l.b16 %v397
        %v495 = vunpack.c.h.b16 %v397
        %v496 = vunpack.c.l.b16 %v398
        %v497 = vunpack.c.h.b16 %v398
        %v498 = vunpack.c.l.b16 %v399
        %v499 = vunpack.c.h.b16 %v399
        %v500 = vunpack.c.l.b16 %v400
        %v501 = vunpack.c.h.b16 %v400
        %v502 = vunpack.c.l.b16 %v401
        %v503 = vunpack.c.h.b16 %v401
        %v504 = vunpack.c.l.b16 %v402
        %v505 = vunpack.c.h.b16 %v402
        %v506 = vunpack.c.l.b16 %v403
        %v507 = vunpack.c.h.b16 %v403
        %v508 = vunpack.c.l.b16 %v404
        %v509 = vunpack.c.h.b16 %v404
        %v510 = vunpack.c.l.b16 %v405
        %v511 = vunpack.c.h.b16 %v405
        %v512 = vpack.c.b16 %v450, %v448
        %v513 = vpack.c.b16 %v451, %v449
        %v514 = vpack.c.b16 %v454, %v452
        %v515 = vpack.c.b16 %v455, %v453
        %v516 = vpack.c.b16 %v458, %v456
        %v517 = vpack.c.b16 %v459, %v457
        %v518 = vpack.c.b16 %v462, %v460
        %v519 = vpack.c.b16 %v463, %v461
        %v520 = vpack.c.b16 %v466, %v464
        %v521 = vpack.c.b16 %v467, %v465
        %v522 = vpack.c.b16 %v470, %v468
        %v523 = vpack.c.b16 %v471, %v469
        %v524 = vpack.c.b16 %v474, %v472
        %v525 = vpack.c.b16 %v475, %v473
        %v526 = vpack.c.b16 %v478, %v476
        %v527 = vpack.c.b16 %v479, %v477
        %v528 = vpack.c.b16 %v482, %v480
        %v529 = vpack.c.b16 %v483, %v481
        %v530 = vpack.c.b16 %v486, %v484
        %v531 = vpack.c.b16 %v487, %v485
        %v532 = vpack.c.b16 %v490, %v488
        %v533 = vpack.c.b16 %v491, %v489
        %v534 = vpack.c.b16 %v494, %v492
        %v535 = vpack.c.b16 %v495, %v493
        %v536 = vpack.c.b16 %v498, %v496
        %v537 = vpack.c.b16 %v499, %v497
        %v538 = vpack.c.b16 %v502, %v500
        %v539 = vpack.c.b16 %v503, %v501
        %v540 = vpack.c.b16 %v506, %v504
        %v541 = vpack.c.b16 %v507, %v505
        %v542 = vpack.c.b16 %v510, %v508
        %v543 = vpack.c.b16 %v511, %v509
        %576 = vmatprep.subr.bf16.mxu0 %v513
        %577 = vmatpush1.bf16.msra.mxu0 %v512
        %578 = vmatprep.subr.bf16.mxu0 %v515
        %579 = vmatpush1.bf16.msra.mxu0 %v514
        %580 = vmatprep.subr.bf16.mxu0 %v517
        %581 = vmatpush1.bf16.msra.mxu0 %v516
        %582 = vmatprep.subr.bf16.mxu0 %v519
        %583 = vmatpush1.bf16.msra.mxu0 %v518
        %584 = vmatprep.subr.bf16.mxu0 %v521
        %585 = vmatpush1.bf16.msra.mxu0 %v520
        %586 = vmatprep.subr.bf16.mxu0 %v523
        %587 = vmatpush1.bf16.msra.mxu0 %v522
        %588 = vmatprep.subr.bf16.mxu0 %v525
        %589 = vmatpush1.bf16.msra.mxu0 %v524
        %590 = vmatprep.subr.bf16.mxu0 %v527
        %591 = vmatpush1.bf16.msra.mxu0 %v526
        %592 = vmatprep.subr.bf16.mxu0 %v529
        %593 = vmatpush1.bf16.msra.mxu0 %v528
        %594 = vmatprep.subr.bf16.mxu0 %v531
        %595 = vmatpush1.bf16.msra.mxu0 %v530
        %596 = vmatprep.subr.bf16.mxu0 %v533
        %597 = vmatpush1.bf16.msra.mxu0 %v532
        %598 = vmatprep.subr.bf16.mxu0 %v535
        %599 = vmatpush1.bf16.msra.mxu0 %v534
        %600 = vmatprep.subr.bf16.mxu0 %v537
        %601 = vmatpush1.bf16.msra.mxu0 %v536
        %602 = vmatprep.subr.bf16.mxu0 %v539
        %603 = vmatpush1.bf16.msra.mxu0 %v538
        %604 = vmatprep.subr.bf16.mxu0 %v541
        %605 = vmatpush1.bf16.msra.mxu0 %v540
        %606 = vmatprep.subr.bf16.mxu0 %v543
        %607 = vmatpush1.bf16.msra.mxu0 %v542
        %608 = vmatprep.mubr.bf16.mxu0 %v413
        %609 = vmatmul.mubr.bf16.gmra.mrb[0].mxu0 %v412
        %v610 = vpop.f32.mrb[0].mxu0
        %v611 = vadd.f32 0.0, %v610
        %v612 = vpop.f32.mrb[0].mxu0
        %v613 = vadd.f32 0.0, %v612
        %v614 = vpop.f32.mrb[0].mxu0
        %v615 = vadd.f32 0.0, %v614
        %v616 = vpop.f32.mrb[0].mxu0
        %v617 = vadd.f32 0.0, %v616
        %618 = vdwg.mxu0
        %v619 = vadd.f32 %v368, %v611
        %v620 = vadd.f32 %v369, %v613
        %v621 = vadd.f32 %v370, %v615
        %v622 = vadd.f32 %v371, %v617
        %623 = vst [vmem:[#allocation2] sm:$0xff] %v619
        %624 = vst [vmem:[#allocation2 + $0x8] sm:$0xff] %v620
        %625 = vst [vmem:[#allocation2 + $0x10] sm:$0x3] %v621
        %626 = vst [vmem:[#allocation2 + $0x18] sm:$0x3] %v622
        %p627 = scmp.eq.s32.totalorder %s26, 1
        // Predicated region
        $region79: #{bitlinear_forward.4} parent=65 // pred_check
          %p628 = pneg %p627
        $region80: #{bitlinear_forward.4} parent=65 // pred_check_branch
          %630 = sbr.rel (%p628) target = $region82
        $region81: #{bitlinear_forward.4} parent=65 // pred_region
          %v631 = vld [vmem:[#allocation2] sm:$0xff]
          %v632 = vld [vmem:[#allocation2 + $0x8] sm:$0xff]
          %v633 = vld [vmem:[#allocation2 + $0x10] sm:$0x3]
          %v634 = vld [vmem:[#allocation2 + $0x18] sm:$0x3]
          %635 = vst [vmem:[%s318] sm:$0xff] %v631
          %636 = vst [vmem:[%s318 + $0x8] sm:$0xff] %v632
          %637 = vst [vmem:[%s318 + $0x10] sm:$0x3] %v633
          %638 = vst [vmem:[%s318 + $0x18] sm:$0x3] %v634
          %v639 = vand.u32 2147483647, %v631
          %v640 = vand.u32 2147483647, %v632
          %v641 = vand.u32 2147483647, %v633
          %v642 = vand.u32 2147483647, %v634
          %vm643 = vcmask 1041408
          %v644 = vsel %vm643, %v641, -inf
          %v645 = vsel %vm643, %v642, -inf
          %v646 = vmax.f32 %v639, %v640
          %v647 = vmax.f32 %v644, %v645
          %v648 = vmax.f32 %v646, %v647
          %649 = vmax.xlane.f32.xlu0 %v648
          %v650 = vpop.xlane.xlu0 %649
          %v651 = vrot.slane %v650, 4
          %v652 = vmax.f32 %v650, %v651
          %v653 = vrot.slane %v652, 2
          %v654 = vmax.f32 %v652, %v653
          %v655 = vrot.slane %v654, 1
          %v656 = vmax.f32 %v654, %v655
          %s657 = vtos %v656
          %v658 = vstv %s657
          %659 = vst [vmem:[%s347] sm:$0xff] %v658
        $region82: #{bitlinear_forward.4} parent=65 // pred_fallthru
          _
        %s660 = sand.u32 %s130, 1
        %s661 = sand.u32 %s130, 1
        %s662 = smul.addr %s661, 32
        %s663 = scalar_lea.vmem [#allocation6], %s662
        %p664 = scmp.lt.s32.totalorder %s24, 0
        %s665 = scalar_select %p664, %s24, 0
        %p666 = scmp.lt.s32.totalorder %s25, 1
        %s667 = scalar_select %p666, %s25, 1
        %s668 = smul.addr %s665, 2
        %s669 = sadd.s32 %s667, %s668
        %s670 = smul.addr %s669, 8
        %s671 = scalar_lea.vmem %s4, %s670
        // Predicated region
        $region83: #{bitlinear_forward.4} parent=65 // pred_check
          %p672 = pneg %p140
        $region84: #{bitlinear_forward.4} parent=65 // pred_check_branch
          %674 = sbr.rel (%p672) target = $region86
        $region85: #{bitlinear_forward.4} parent=65 // pred_region
          %s675 = smul.u32 2, %s24
          %s676 = smul.u32 2, %s25
          %s677 = smul.addr %s675, 4
          %s678 = sadd.s32 %s676, %s677
          %s679 = smul.addr %s678, 8
          %s680 = scalar_lea.vmem %s3, %s679
          // Predicated region
          $region87: #{bitlinear_forward.4} parent=85 // pred_check
            _
          $region88: #{bitlinear_forward.4} parent=85 // pred_check_branch
            %682 = sbr.rel (0) target = $region90
          $region89: #{bitlinear_forward.4} parent=85 // pred_region
            // Predicated region
            $region91: #{bitlinear_forward.4} parent=89 // pred_check
              _
            $region92: #{bitlinear_forward.4} parent=89 // pred_check_branch
              %684 = sbr.rel (0) target = $region94
            $region93: #{bitlinear_forward.4} parent=89 // pred_region
              loop: start=0, step=1, limit=1
              $region95: #{bitlinear_forward.4} parent=93 // loop_pre_header
                _
              $region96: #{bitlinear_forward.4} parent=93 // loop_header
                %s686 = sphi 0, %s690
                %p687 = scmp.ge.s32.totalorder %s686, 1
                %s691 = sphi %s663, %s663
                %s692 = sphi %s680, %s680
              $region97: #{bitlinear_forward.4} parent=93 // loop_header_branch
                %689 = sbr.rel (%p687) target = $region101
              $region98: #{bitlinear_forward.4} parent=93 // loop_body
                %v693 = vld [vmem:[%s691] sm:$0xff]
                %694 = vst [vmem:[%s692] sm:$0xff] %v693
                %v695 = vld [vmem:[%s691 + $0x8] sm:$0xff]
                %696 = vst [vmem:[%s692 + $0x8] sm:$0xff] %v695
                %v697 = vld [vmem:[%s691 + $0x10] sm:$0xff]
                %698 = vst [vmem:[%s692 + $0x20] sm:$0xff] %v697
                %v699 = vld [vmem:[%s691 + $0x18] sm:$0xff]
                %700 = vst [vmem:[%s692 + $0x28] sm:$0xff] %v699
              $region99: #{bitlinear_forward.4} parent=93 // loop_footer
                %s690 = sadd.s32 1, %s686
              $region100: #{bitlinear_forward.4} parent=93 // loop_footer_branch
                %685 = sbr.rel target = $region96
              $region101: #{bitlinear_forward.4} parent=93 // loop_exit
                _
            $region94: #{bitlinear_forward.4} parent=89 // pred_fallthru
              _
            // Predicated region
            $region102: #{bitlinear_forward.4} parent=89 // pred_check
              _
            $region103: #{bitlinear_forward.4} parent=89 // pred_check_branch
              %702 = sbr.rel target = $region105
            $region104: #{bitlinear_forward.4} parent=89 // pred_region
              _
            $region105: #{bitlinear_forward.4} parent=89 // pred_fallthru
              _
          $region90: #{bitlinear_forward.4} parent=85 // pred_fallthru
            _
          %703 = vnop
        $region86: #{bitlinear_forward.4} parent=65 // pred_fallthru
          _
        // Predicated region
        $region106: #{bitlinear_forward.4} parent=65 // pred_check
          %p704 = pneg %p168
        $region107: #{bitlinear_forward.4} parent=65 // pred_check_branch
          %706 = sbr.rel (%p704) target = $region109
        $region108: #{bitlinear_forward.4} parent=65 // pred_region
          _
        $region109: #{bitlinear_forward.4} parent=65 // pred_fallthru
          _
      $region66: #{bitlinear_forward.4} parent=5 // pred_fallthru
        _
      %p707 = scmp.le.s32.totalorder 2, %s14
      // Predicated region
      $region110: #{bitlinear_forward.4} parent=5 // pred_check
        %p708 = pneg %p707
      $region111: #{bitlinear_forward.4} parent=5 // pred_check_branch
        %710 = sbr.rel (%p708) target = $region113
      $region112: #{bitlinear_forward.4} parent=5 // pred_region
        %s711 = ssub.s32 %s14, 2
        // Predicated region
        $region114: #{bitlinear_forward.4} parent=112 // pred_check
          %p712 = pneg %p146
        $region115: #{bitlinear_forward.4} parent=112 // pred_check_branch
          %714 = sbr.rel (%p712) target = $region117
        $region116: #{bitlinear_forward.4} parent=112 // pred_region
          %s715 = sand.u32 %s131, 1
          %s716 = sand.u32 %s131, 1
          %s717 = smul.addr %s716, 32
          %s718 = scalar_lea.vmem [#allocation6], %s717
        $region117: #{bitlinear_forward.4} parent=112 // pred_fallthru
          _
        // Predicated region
        $region118: #{bitlinear_forward.4} parent=112 // pred_check
          %p719 = pneg %p174
        $region119: #{bitlinear_forward.4} parent=112 // pred_check_branch
          %721 = sbr.rel (%p719) target = $region121
        $region120: #{bitlinear_forward.4} parent=112 // pred_region
          %p722 = scmp.lt.s32.totalorder %s27, 0
          %s723 = scalar_select %p722, %s27, 0
          %p724 = scmp.lt.s32.totalorder %s28, 1
          %s725 = scalar_select %p724, %s28, 1
          %s726 = smul.addr %s723, 2
          %s727 = sadd.s32 %s725, %s726
          %s728 = smul.addr %s727, 8
          %s729 = scalar_lea.vmem %s4, %s728
        $region121: #{bitlinear_forward.4} parent=112 // pred_fallthru
          _
      $region113: #{bitlinear_forward.4} parent=5 // pred_fallthru
        _
    $region6: #{bitlinear_forward.4} parent=1 // loop_footer
      %s18 = sadd.s32 1, %s14
    $region7: #{bitlinear_forward.4} parent=1 // loop_footer_branch
      %13 = sbr.rel target = $region3
    $region8: #{bitlinear_forward.4} parent=1 // loop_exit
      _
    %730 = vsyncpa [#allocation5], 1
    %s731 = scalar_lea.sflag [#allocation5], 1
    %732 = vsyncpa %s731, 1

</llo_original>
